<compile_context>
chip_gen: v5e
topology: v5e:2x2
jax: 0.10.0
libtpu: 0.0.40
codegen_flags: <defaults>
</compile_context>

<pallas_src>
import functools

import jax
import jax.numpy as jnp
from jax import lax
from jax.experimental import pallas as pl
from jax.experimental.pallas import tpu as pltpu


# ---------------------------------------------------------------------------
# helpers
# ---------------------------------------------------------------------------
def _median9(p):
    """Median of 9 arrays via Paeth's selection network (min/max on the VPU)."""
    def mnmx(i, j):
        a, b = p[i], p[j]
        p[i] = jnp.minimum(a, b)
        p[j] = jnp.maximum(a, b)

    mnmx(1, 2); mnmx(4, 5); mnmx(7, 8)
    mnmx(0, 1); mnmx(3, 4); mnmx(6, 7)
    mnmx(1, 2); mnmx(4, 5); mnmx(7, 8)
    mnmx(0, 3); mnmx(5, 8); mnmx(4, 7)
    mnmx(3, 6); mnmx(1, 4); mnmx(2, 5)
    mnmx(4, 7); mnmx(4, 2); mnmx(6, 4); mnmx(4, 2)
    return p[4]


def _pick_compute_dtype():
    """bf16 stencil math on v6e / v7x (bf16 VPU); f32 on v5e and older."""
    try:
        kind = jax.devices()[0].device_kind.lower()
    except Exception:
        return jnp.float32
    if ("v6" in kind) or ("v7" in kind) or ("7x" in kind):
        return jnp.bfloat16
    return jnp.float32


_COMPUTE_DTYPE = _pick_compute_dtype()


# ---------------------------------------------------------------------------
# image kernel
# ---------------------------------------------------------------------------
# params (SMEM, (B, 8) f32):
#   0: invert flag   1: sharpness flag   2: median-blur flag   3: rotation flag
#   4: cos(angle)    5: sin(angle)       6: sharpness factor   7: (pad)
def _image_aug_kernel(params_ref, img_ref, out_ref, *, true_h, true_w,
                      compute_dtype):
    b = pl.program_id(0)
    inv_flag = params_ref[b, 0]
    sharp_flag = params_ref[b, 1]
    med_flag = params_ref[b, 2]
    sharp_factor = params_ref[b, 6]

    shape = img_ref.shape  # (1, C, H, Wp)

    # --- hoisted edge masks: built once, shared by all shifts + interior ----
    hi = lax.broadcasted_iota(jnp.int32, shape, 2)
    wi = lax.broadcasted_iota(jnp.int32, shape, 3)
    top = hi == 0
    bot = hi == true_h - 1
    left = wi == 0
    right = wi == true_w - 1
    interior = jnp.logical_not((top | bot) | (left | right))

    def shift_h(v, s, repl):
        # shift by s in {-1,+1} along H; the wrapped-around edge row is
        # replaced by `repl` (pass v for replicate padding, zeros for zero pad)
        r = jnp.roll(v, s, axis=2)
        return jnp.where(top if s > 0 else bot, repl, r)

    def shift_w(v, s, repl):
        r = jnp.roll(v, s, axis=3)
        return jnp.where(left if s > 0 else right, repl, r)

    x = img_ref[...]  # (1, C, H, Wp), float32 in [0, 1]

    # --- K.RandomInvert (max_val = 1.0): single cheap select ----------------
    out_ref[...] = jnp.where(inv_flag > 0.5, 1.0 - x, x)

    # TODO(synk): K.RandomEqualize (per-image 256-bin histogram equalization)
    # has no clean Pallas equivalent (histogram + gather); skipped.

    # --- K.RandomSharpness: 3x3 [[1,1,1],[1,5,1],[1,1,1]]/13, blended toward
    #     the filtered image on the interior, border kept (Kornia semantics).
    #     Skipped entirely per-sample when the flag is off. -------------------
    @pl.when(sharp_flag > 0.5)
    def _sharpness():
        xb = out_ref[...].astype(compute_dtype)
        f = sharp_factor.astype(compute_dtype)
        # separable replicate-padded box sum: 2 H-rolls + 2 W-rolls
        rowsum = shift_h(xb, 1, xb) + xb + shift_h(xb, -1, xb)
        boxsum = shift_w(rowsum, 1, rowsum) + rowsum + shift_w(rowsum, -1, rowsum)
        degenerate = jnp.clip((boxsum + 4.0 * xb) * (1.0 / 13.0), 0.0, 1.0)
        blended = xb + f * (degenerate - xb)       # factor in [0, 0.5]
        out_ref[...] = jnp.where(interior, blended, xb).astype(out_ref.dtype)

    # --- K.RandomMedianBlur (3x3, zero padding like kornia's conv2d path) ---
    @pl.when(med_flag > 0.5)
    def _median():
        xb = out_ref[...].astype(compute_dtype)
        zeros = jnp.zeros_like(xb)
        # 2 H-rolls, then 2 W-rolls per row: 8 rolls total for 9 neighbors
        xu = shift_h(xb, 1, zeros)
        xd = shift_h(xb, -1, zeros)
        p = []
        for row in (xu, xb, xd):
            p.append(shift_w(row, 1, zeros))
            p.append(row)
            p.append(shift_w(row, -1, zeros))
        out_ref[...] = _median9(p).astype(out_ref.dtype)

    # TODO(synk): K.RandomRotation image warp (bilinear grid_sample gather) is
    # not implemented in-kernel; the matching keypoint rotation IS applied in
    # the wrapper below.


# ---------------------------------------------------------------------------
# wrapper
# ---------------------------------------------------------------------------
@jax.jit
def augmenter_forward(image, keypoints, params):
    B, C, H, W = image.shape

    # pad W (lane axis) to a multiple of 128 for unmasked lane-dense stores;
    # the kernel's edge masks use the true W so borders stay correct.
    Wp = ((W + 127) // 128) * 128
    img_in = image
    if Wp != W:
        img_in = jnp.pad(image, ((0, 0), (0, 0), (0, 0), (0, Wp - W)),
                         mode="edge")

    block_bytes = C * H * Wp * jnp.dtype(image.dtype).itemsize
    # in/out double buffers + ~10 full-block temporaries live in the median
    # branch; bound the scoped VMEM explicitly (v7x only has 64 MiB physical).
    vmem_limit = int(min(max(32 << 20, 16 * block_bytes), 64 << 20))
    # TODO(synk): for images where 16*block_bytes exceeds ~64 MiB, tile H into
    # halo'd row strips instead of raising the limit further.

    img_out = pl.pallas_call(
        functools.partial(_image_aug_kernel, true_h=H, true_w=W,
                          compute_dtype=_COMPUTE_DTYPE),
        out_shape=jax.ShapeDtypeStruct((B, C, H, Wp), image.dtype),
        grid=(B,),
        in_specs=[
            pl.BlockSpec(memory_space=pltpu.MemorySpace.SMEM),
            pl.BlockSpec((1, C, H, Wp), lambda b: (b, 0, 0, 0)),
        ],
        out_specs=pl.BlockSpec((1, C, H, Wp), lambda b: (b, 0, 0, 0)),
        compiler_params=pltpu.CompilerParams(
            dimension_semantics=("parallel",),   # disjoint blocks -> 2 TCs on v7x
            vmem_limit_bytes=vmem_limit),
    )(params, img_in)

    if Wp != W:
        img_out = img_out[..., :W]

    # Keypoint rotation + normalization in plain jnp: the math is B*N*2 FLOPs,
    # so a pallas_call here is pure launch/DMA overhead with masked stores.
    rot_flag = params[:, 3][:, None, None]
    cos_a = params[:, 4][:, None, None]
    sin_a = params[:, 5][:, None, None]
    kx = keypoints[..., 0:1]
    ky = keypoints[..., 1:2]
    cx = (W - 1.0) * 0.5
    cy = (H - 1.0) * 0.5
    xr = cos_a * (kx - cx) - sin_a * (ky - cy) + cx
    yr = sin_a * (kx - cx) + cos_a * (ky - cy) + cy
    kx = jnp.where(rot_flag > 0.5, xr, kx)
    ky = jnp.where(rot_flag > 0.5, yr, ky)
    # keypoints / [image.shape[-1], image.shape[-2]]  ==  (x / W, y / H)
    kp_out = jnp.concatenate([kx * (1.0 / W), ky * (1.0 / H)],
                             axis=-1).astype(keypoints.dtype)

    return img_out, kp_out


class Augmenter:
    """Deterministic JAX/Pallas re-implementation of the Kornia Augmenter."""

    def __init__(self, p_augmentation: float, rotation: float = 0.1):
        self.p_augmentation = p_augmentation
        self.rotation = rotation  # degrees

    def __call__(self, image, keypoints, key, use_geometric: bool = False):
        # TODO(synk): the `geometric` branch (RandomAffine / Perspective /
        # Elastic / ThinPlateSpline) is declared in __init__ but never used in
        # the reference forward(); not implemented.
        B = image.shape[0]
        kf, ka, ks = jax.random.split(key, 3)
        flags = jax.random.bernoulli(
            kf, self.p_augmentation, (B, 4)).astype(jnp.float32)
        angle = jax.random.uniform(
            ka, (B,), jnp.float32, -self.rotation, self.rotation) * (jnp.pi / 180.0)
        sharp = jax.random.uniform(ks, (B,), jnp.float32, 0.0, 0.5)
        params = jnp.concatenate(
            [flags,
             jnp.cos(angle)[:, None],
             jnp.sin(angle)[:, None],
             sharp[:, None],
             jnp.zeros((B, 1), jnp.float32)], axis=1)   # (B, 8)
        return augmenter_forward(image, keypoints, params)


# ---------------------------------------------------------------------------
if __name__ == "__main__":
    key = jax.random.PRNGKey(0)
    B, C, H, W, N = 2, 1, 64, 128, 8

    k_img, k_x, k_y, k_aug = jax.random.split(key, 4)
    image = jax.random.uniform(k_img, (B, C, H, W), jnp.float32)           # [0,1]
    keypoints = jnp.stack(
        [jax.random.uniform(k_x, (B, N), jnp.float32) * W,                 # x in [0,W)
         jax.random.uniform(k_y, (B, N), jnp.float32) * H],                # y in [0,H)
        axis=-1)                                                           # (B, N, 2)

    aug = Augmenter(p_augmentation=0.5, rotation=0.1)
    img_out, kp_out = aug(image, keypoints, key=k_aug)
    jax.block_until_ready((img_out, kp_out))

    assert img_out.shape == (B, C, H, W) and img_out.dtype == jnp.float32
    assert kp_out.shape == (B, N, 2) and kp_out.dtype == jnp.float32
    assert bool(jnp.all(jnp.isfinite(img_out))) and bool(jnp.all(jnp.isfinite(kp_out)))
    print("KERNEL_OK")
</pallas_src>

<mosaic_0001>
module attributes {stable_mosaic.version = 11 : i64} {
  func.func @_image_aug_kernel(%arg0: i32, %arg1: memref<2x8xf32, #tpu.memory_space<smem>>, %arg2: memref<1x1x64x128xf32, #tpu.memory_space<vmem>>, %arg3: memref<1x1x64x128xf32, #tpu.memory_space<vmem>>) attributes {dimension_semantics = [#tpu.dimension_semantics<parallel>], iteration_bounds = array<i64: 2>, scalar_prefetch = 0 : i64, scratch_operands = 0 : i64, tpu.core_type = #tpu.core_type<tc>, window_params = [{transform_indices = @transform_0, window_bounds = array<i64: 2, 8>}, {transform_indices = @transform_1, window_bounds = array<i64: 1, 1, 64, 128>}, {transform_indices = @transform_2, window_bounds = array<i64: 1, 1, 64, 128>}]} {
    %0 = arith.index_cast %arg0 : i32 to index
    %c0 = arith.constant 0 : index
    %1 = memref.load %arg1[%0, %c0] : memref<2x8xf32, #tpu.memory_space<smem>>
    %2 = arith.index_cast %arg0 : i32 to index
    %c1 = arith.constant 1 : index
    %3 = memref.load %arg1[%2, %c1] : memref<2x8xf32, #tpu.memory_space<smem>>
    %4 = arith.index_cast %arg0 : i32 to index
    %c2 = arith.constant 2 : index
    %5 = memref.load %arg1[%4, %c2] : memref<2x8xf32, #tpu.memory_space<smem>>
    %6 = arith.index_cast %arg0 : i32 to index
    %c6 = arith.constant 6 : index
    %7 = memref.load %arg1[%6, %c6] : memref<2x8xf32, #tpu.memory_space<smem>>
    %8 = tpu.iota {dimensions = array<i32: 2>} : vector<1x1x64x128xi32>
    %9 = tpu.iota {dimensions = array<i32: 3>} : vector<1x1x64x128xi32>
    %c0_i32 = arith.constant 0 : i32
    %10 = vector.broadcast %c0_i32 : i32 to vector<1x1x64x128xi32>
    %11 = arith.cmpi eq, %8, %10 : vector<1x1x64x128xi32>
    %c63_i32 = arith.constant 63 : i32
    %12 = vector.broadcast %c63_i32 : i32 to vector<1x1x64x128xi32>
    %13 = arith.cmpi eq, %8, %12 : vector<1x1x64x128xi32>
    %c0_i32_0 = arith.constant 0 : i32
    %14 = vector.broadcast %c0_i32_0 : i32 to vector<1x1x64x128xi32>
    %15 = arith.cmpi eq, %9, %14 : vector<1x1x64x128xi32>
    %c127_i32 = arith.constant 127 : i32
    %16 = vector.broadcast %c127_i32 : i32 to vector<1x1x64x128xi32>
    %17 = arith.cmpi eq, %9, %16 : vector<1x1x64x128xi32>
    %18 = arith.ori %11, %13 : vector<1x1x64x128xi1>
    %19 = arith.ori %15, %17 : vector<1x1x64x128xi1>
    %20 = arith.ori %18, %19 : vector<1x1x64x128xi1>
    %cst = arith.constant dense<true> : vector<1x1x64x128xi1>
    %21 = arith.xori %20, %cst : vector<1x1x64x128xi1>
    %c0_1 = arith.constant 0 : index
    %c0_2 = arith.constant 0 : index
    %c0_3 = arith.constant 0 : index
    %c0_4 = arith.constant 0 : index
    %22 = vector.load %arg2[%c0_1, %c0_2, %c0_3, %c0_4] : memref<1x1x64x128xf32, #tpu.memory_space<vmem>>, vector<1x1x64x128xf32>
    %cst_5 = arith.constant 5.000000e-01 : f32
    %23 = arith.cmpf ogt, %1, %cst_5 : f32
    %cst_6 = arith.constant 1.000000e+00 : f32
    %24 = vector.broadcast %cst_6 : f32 to vector<1x1x64x128xf32>
    %25 = arith.subf %24, %22 : vector<1x1x64x128xf32>
    %26 = arith.select %23, %25, %22 : vector<1x1x64x128xf32>
    %c0_7 = arith.constant 0 : index
    %c0_8 = arith.constant 0 : index
    %c0_9 = arith.constant 0 : index
    %c0_10 = arith.constant 0 : index
    %27 = vector.load %arg3[%c0_7, %c0_8, %c0_9, %c0_10] : memref<1x1x64x128xf32, #tpu.memory_space<vmem>>, vector<1x1x64x128xf32>
    tpu.vector_store %arg3[%c0_7, %c0_8, %c0_9, %c0_10], %26 {strides = array<i32>} : memref<1x1x64x128xf32, #tpu.memory_space<vmem>>, vector<1x1x64x128xf32>,
    %cst_11 = arith.constant 5.000000e-01 : f32
    %28 = arith.cmpf ogt, %3, %cst_11 : f32
    %29 = arith.extui %28 : i1 to i32
    %c0_i32_12 = arith.constant 0 : i32
    %30 = arith.cmpi ne, %29, %c0_i32_12 : i32
    scf.if %30 {
      %c0_15 = arith.constant 0 : index
      %c0_16 = arith.constant 0 : index
      %c0_17 = arith.constant 0 : index
      %c0_18 = arith.constant 0 : index
      %34 = vector.load %arg3[%c0_15, %c0_16, %c0_17, %c0_18] : memref<1x1x64x128xf32, #tpu.memory_space<vmem>>, vector<1x1x64x128xf32>
      %35 = vector.extract_strided_slice %34 {offsets = [0, 0, 63, 0], sizes = [1, 1, 1, 128], strides = [1, 1, 1, 1]} : vector<1x1x64x128xf32> to vector<1x1x1x128xf32>
      %36 = vector.extract_strided_slice %34 {offsets = [0, 0, 0, 0], sizes = [1, 1, 63, 128], strides = [1, 1, 1, 1]} : vector<1x1x64x128xf32> to vector<1x1x63x128xf32>
      %37 = tpu.concatenate %35, %36 in 2 : vector<1x1x1x128xf32>, vector<1x1x63x128xf32> -> vector<1x1x64x128xf32>
      %38 = arith.select %11, %34, %37 : vector<1x1x64x128xi1>, vector<1x1x64x128xf32>
      %39 = arith.addf %38, %34 : vector<1x1x64x128xf32>
      %40 = vector.extract_strided_slice %34 {offsets = [0, 0, 1, 0], sizes = [1, 1, 63, 128], strides = [1, 1, 1, 1]} : vector<1x1x64x128xf32> to vector<1x1x63x128xf32>
      %41 = vector.extract_strided_slice %34 {offsets = [0, 0, 0, 0], sizes = [1, 1, 1, 128], strides = [1, 1, 1, 1]} : vector<1x1x64x128xf32> to vector<1x1x1x128xf32>
      %42 = tpu.concatenate %40, %41 in 2 : vector<1x1x63x128xf32>, vector<1x1x1x128xf32> -> vector<1x1x64x128xf32>
      %43 = arith.select %13, %34, %42 : vector<1x1x64x128xi1>, vector<1x1x64x128xf32>
      %44 = arith.addf %39, %43 : vector<1x1x64x128xf32>
      %45 = vector.extract_strided_slice %44 {offsets = [0, 0, 0, 127], sizes = [1, 1, 64, 1], strides = [1, 1, 1, 1]} : vector<1x1x64x128xf32> to vector<1x1x64x1xf32>
      %46 = vector.extract_strided_slice %44 {offsets = [0, 0, 0, 0], sizes = [1, 1, 64, 127], strides = [1, 1, 1, 1]} : vector<1x1x64x128xf32> to vector<1x1x64x127xf32>
      %47 = tpu.concatenate %45, %46 in 3 : vector<1x1x64x1xf32>, vector<1x1x64x127xf32> -> vector<1x1x64x128xf32>
      %48 = arith.select %15, %44, %47 : vector<1x1x64x128xi1>, vector<1x1x64x128xf32>
      %49 = arith.addf %48, %44 : vector<1x1x64x128xf32>
      %50 = vector.extract_strided_slice %44 {offsets = [0, 0, 0, 1], sizes = [1, 1, 64, 127], strides = [1, 1, 1, 1]} : vector<1x1x64x128xf32> to vector<1x1x64x127xf32>
      %51 = vector.extract_strided_slice %44 {offsets = [0, 0, 0, 0], sizes = [1, 1, 64, 1], strides = [1, 1, 1, 1]} : vector<1x1x64x128xf32> to vector<1x1x64x1xf32>
      %52 = tpu.concatenate %50, %51 in 3 : vector<1x1x64x127xf32>, vector<1x1x64x1xf32> -> vector<1x1x64x128xf32>
      %53 = arith.select %17, %44, %52 : vector<1x1x64x128xi1>, vector<1x1x64x128xf32>
      %54 = arith.addf %49, %53 : vector<1x1x64x128xf32>
      %cst_19 = arith.constant 4.000000e+00 : f32
      %55 = vector.broadcast %cst_19 : f32 to vector<1x1x64x128xf32>
      %56 = arith.mulf %55, %34 : vector<1x1x64x128xf32>
      %57 = arith.addf %54, %56 : vector<1x1x64x128xf32>
      %cst_20 = arith.constant 0.0769230798 : f32
      %58 = vector.broadcast %cst_20 : f32 to vector<1x1x64x128xf32>
      %59 = arith.mulf %57, %58 : vector<1x1x64x128xf32>
      %cst_21 = arith.constant 0.000000e+00 : f32
      %cst_22 = arith.constant 1.000000e+00 : f32
      %60 = vector.broadcast %cst_21 : f32 to vector<1x1x64x128xf32>
      %61 = arith.maximumf %60, %59 : vector<1x1x64x128xf32>
      %62 = vector.broadcast %cst_22 : f32 to vector<1x1x64x128xf32>
      %63 = arith.minimumf %62, %61 : vector<1x1x64x128xf32>
      %64 = arith.subf %63, %34 : vector<1x1x64x128xf32>
      %65 = vector.broadcast %7 : f32 to vector<1x1x64x128xf32>
      %66 = arith.mulf %65, %64 : vector<1x1x64x128xf32>
      %67 = arith.addf %34, %66 : vector<1x1x64x128xf32>
      %68 = arith.select %21, %67, %34 : vector<1x1x64x128xi1>, vector<1x1x64x128xf32>
      %c0_23 = arith.constant 0 : index
      %c0_24 = arith.constant 0 : index
      %c0_25 = arith.constant 0 : index
      %c0_26 = arith.constant 0 : index
      %69 = vector.load %arg3[%c0_23, %c0_24, %c0_25, %c0_26] : memref<1x1x64x128xf32, #tpu.memory_space<vmem>>, vector<1x1x64x128xf32>
      tpu.vector_store %arg3[%c0_23, %c0_24, %c0_25, %c0_26], %68 {strides = array<i32>} : memref<1x1x64x128xf32, #tpu.memory_space<vmem>>, vector<1x1x64x128xf32>,
    } else {
    }
    %cst_13 = arith.constant 5.000000e-01 : f32
    %31 = arith.cmpf ogt, %5, %cst_13 : f32
    %32 = arith.extui %31 : i1 to i32
    %c0_i32_14 = arith.constant 0 : i32
    %33 = arith.cmpi ne, %32, %c0_i32_14 : i32
    scf.if %33 {
      %c0_15 = arith.constant 0 : index
      %c0_16 = arith.constant 0 : index
      %c0_17 = arith.constant 0 : index
      %c0_18 = arith.constant 0 : index
      %34 = vector.load %arg3[%c0_15, %c0_16, %c0_17, %c0_18] : memref<1x1x64x128xf32, #tpu.memory_space<vmem>>, vector<1x1x64x128xf32>
      %cst_19 = arith.constant 0.000000e+00 : f32
      %35 = vector.broadcast %cst_19 : f32 to vector<1x1x64x128xf32>
      %36 = vector.extract_strided_slice %34 {offsets = [0, 0, 63, 0], sizes = [1, 1, 1, 128], strides = [1, 1, 1, 1]} : vector<1x1x64x128xf32> to vector<1x1x1x128xf32>
      %37 = vector.extract_strided_slice %34 {offsets = [0, 0, 0, 0], sizes = [1, 1, 63, 128], strides = [1, 1, 1, 1]} : vector<1x1x64x128xf32> to vector<1x1x63x128xf32>
      %38 = tpu.concatenate %36, %37 in 2 : vector<1x1x1x128xf32>, vector<1x1x63x128xf32> -> vector<1x1x64x128xf32>
      %39 = arith.select %11, %35, %38 : vector<1x1x64x128xi1>, vector<1x1x64x128xf32>
      %40 = vector.extract_strided_slice %34 {offsets = [0, 0, 1, 0], sizes = [1, 1, 63, 128], strides = [1, 1, 1, 1]} : vector<1x1x64x128xf32> to vector<1x1x63x128xf32>
      %41 = vector.extract_strided_slice %34 {offsets = [0, 0, 0, 0], sizes = [1, 1, 1, 128], strides = [1, 1, 1, 1]} : vector<1x1x64x128xf32> to vector<1x1x1x128xf32>
      %42 = tpu.concatenate %40, %41 in 2 : vector<1x1x63x128xf32>, vector<1x1x1x128xf32> -> vector<1x1x64x128xf32>
      %43 = arith.select %13, %35, %42 : vector<1x1x64x128xi1>, vector<1x1x64x128xf32>
      %44 = vector.extract_strided_slice %39 {offsets = [0, 0, 0, 127], sizes = [1, 1, 64, 1], strides = [1, 1, 1, 1]} : vector<1x1x64x128xf32> to vector<1x1x64x1xf32>
      %45 = vector.extract_strided_slice %39 {offsets = [0, 0, 0, 0], sizes = [1, 1, 64, 127], strides = [1, 1, 1, 1]} : vector<1x1x64x128xf32> to vector<1x1x64x127xf32>
      %46 = tpu.concatenate %44, %45 in 3 : vector<1x1x64x1xf32>, vector<1x1x64x127xf32> -> vector<1x1x64x128xf32>
      %47 = arith.select %15, %35, %46 : vector<1x1x64x128xi1>, vector<1x1x64x128xf32>
      %48 = vector.extract_strided_slice %39 {offsets = [0, 0, 0, 1], sizes = [1, 1, 64, 127], strides = [1, 1, 1, 1]} : vector<1x1x64x128xf32> to vector<1x1x64x127xf32>
      %49 = vector.extract_strided_slice %39 {offsets = [0, 0, 0, 0], sizes = [1, 1, 64, 1], strides = [1, 1, 1, 1]} : vector<1x1x64x128xf32> to vector<1x1x64x1xf32>
      %50 = tpu.concatenate %48, %49 in 3 : vector<1x1x64x127xf32>, vector<1x1x64x1xf32> -> vector<1x1x64x128xf32>
      %51 = arith.select %17, %35, %50 : vector<1x1x64x128xi1>, vector<1x1x64x128xf32>
      %52 = vector.extract_strided_slice %34 {offsets = [0, 0, 0, 127], sizes = [1, 1, 64, 1], strides = [1, 1, 1, 1]} : vector<1x1x64x128xf32> to vector<1x1x64x1xf32>
      %53 = vector.extract_strided_slice %34 {offsets = [0, 0, 0, 0], sizes = [1, 1, 64, 127], strides = [1, 1, 1, 1]} : vector<1x1x64x128xf32> to vector<1x1x64x127xf32>
      %54 = tpu.concatenate %52, %53 in 3 : vector<1x1x64x1xf32>, vector<1x1x64x127xf32> -> vector<1x1x64x128xf32>
      %55 = arith.select %15, %35, %54 : vector<1x1x64x128xi1>, vector<1x1x64x128xf32>
      %56 = vector.extract_strided_slice %34 {offsets = [0, 0, 0, 1], sizes = [1, 1, 64, 127], strides = [1, 1, 1, 1]} : vector<1x1x64x128xf32> to vector<1x1x64x127xf32>
      %57 = vector.extract_strided_slice %34 {offsets = [0, 0, 0, 0], sizes = [1, 1, 64, 1], strides = [1, 1, 1, 1]} : vector<1x1x64x128xf32> to vector<1x1x64x1xf32>
      %58 = tpu.concatenate %56, %57 in 3 : vector<1x1x64x127xf32>, vector<1x1x64x1xf32> -> vector<1x1x64x128xf32>
      %59 = arith.select %17, %35, %58 : vector<1x1x64x128xi1>, vector<1x1x64x128xf32>
      %60 = vector.extract_strided_slice %43 {offsets = [0, 0, 0, 127], sizes = [1, 1, 64, 1], strides = [1, 1, 1, 1]} : vector<1x1x64x128xf32> to vector<1x1x64x1xf32>
      %61 = vector.extract_strided_slice %43 {offsets = [0, 0, 0, 0], sizes = [1, 1, 64, 127], strides = [1, 1, 1, 1]} : vector<1x1x64x128xf32> to vector<1x1x64x127xf32>
      %62 = tpu.concatenate %60, %61 in 3 : vector<1x1x64x1xf32>, vector<1x1x64x127xf32> -> vector<1x1x64x128xf32>
      %63 = arith.select %15, %35, %62 : vector<1x1x64x128xi1>, vector<1x1x64x128xf32>
      %64 = vector.extract_strided_slice %43 {offsets = [0, 0, 0, 1], sizes = [1, 1, 64, 127], strides = [1, 1, 1, 1]} : vector<1x1x64x128xf32> to vector<1x1x64x127xf32>
      %65 = vector.extract_strided_slice %43 {offsets = [0, 0, 0, 0], sizes = [1, 1, 64, 1], strides = [1, 1, 1, 1]} : vector<1x1x64x128xf32> to vector<1x1x64x1xf32>
      %66 = tpu.concatenate %64, %65 in 3 : vector<1x1x64x127xf32>, vector<1x1x64x1xf32> -> vector<1x1x64x128xf32>
      %67 = arith.select %17, %35, %66 : vector<1x1x64x128xi1>, vector<1x1x64x128xf32>
      %68 = arith.minimumf %39, %51 : vector<1x1x64x128xf32>
      %69 = arith.maximumf %39, %51 : vector<1x1x64x128xf32>
      %70 = arith.minimumf %34, %59 : vector<1x1x64x128xf32>
      %71 = arith.maximumf %34, %59 : vector<1x1x64x128xf32>
      %72 = arith.minimumf %43, %67 : vector<1x1x64x128xf32>
      %73 = arith.maximumf %43, %67 : vector<1x1x64x128xf32>
      %74 = arith.minimumf %47, %68 : vector<1x1x64x128xf32>
      %75 = arith.maximumf %47, %68 : vector<1x1x64x128xf32>
      %76 = arith.minimumf %55, %70 : vector<1x1x64x128xf32>
      %77 = arith.maximumf %55, %70 : vector<1x1x64x128xf32>
      %78 = arith.minimumf %63, %72 : vector<1x1x64x128xf32>
      %79 = arith.maximumf %63, %72 : vector<1x1x64x128xf32>
      %80 = arith.minimumf %75, %69 : vector<1x1x64x128xf32>
      %81 = arith.maximumf %75, %69 : vector<1x1x64x128xf32>
      %82 = arith.minimumf %77, %71 : vector<1x1x64x128xf32>
      %83 = arith.maximumf %77, %71 : vector<1x1x64x128xf32>
      %84 = arith.minimumf %79, %73 : vector<1x1x64x128xf32>
      %85 = arith.maximumf %79, %73 : vector<1x1x64x128xf32>
      %86 = arith.maximumf %74, %76 : vector<1x1x64x128xf32>
      %87 = arith.minimumf %83, %85 : vector<1x1x64x128xf32>
      %88 = arith.minimumf %82, %84 : vector<1x1x64x128xf32>
      %89 = arith.maximumf %82, %84 : vector<1x1x64x128xf32>
      %90 = arith.maximumf %86, %78 : vector<1x1x64x128xf32>
      %91 = arith.maximumf %80, %88 : vector<1x1x64x128xf32>
      %92 = arith.minimumf %81, %87 : vector<1x1x64x128xf32>
      %93 = arith.minimumf %91, %89 : vector<1x1x64x128xf32>
      %94 = arith.minimumf %93, %92 : vector<1x1x64x128xf32>
      %95 = arith.maximumf %93, %92 : vector<1x1x64x128xf32>
      %96 = arith.maximumf %90, %94 : vector<1x1x64x128xf32>
      %97 = arith.minimumf %96, %95 : vector<1x1x64x128xf32>
      %c0_20 = arith.constant 0 : index
      %c0_21 = arith.constant 0 : index
      %c0_22 = arith.constant 0 : index
      %c0_23 = arith.constant 0 : index
      %98 = vector.load %arg3[%c0_20, %c0_21, %c0_22, %c0_23] : memref<1x1x64x128xf32, #tpu.memory_space<vmem>>, vector<1x1x64x128xf32>
      tpu.vector_store %arg3[%c0_20, %c0_21, %c0_22, %c0_23], %97 {strides = array<i32>} : memref<1x1x64x128xf32, #tpu.memory_space<vmem>>, vector<1x1x64x128xf32>,
    } else {
    }
    return
  }
  func.func @transform_0(%arg0: i32) -> (i32, i32) {
    %c0_i32 = arith.constant 0 : i32
    %c0_i32_0 = arith.constant 0 : i32
    %c0_i32_1 = arith.constant 0 : i32
    return %c0_i32, %c0_i32_0 : i32, i32
  }
  func.func @transform_1(%arg0: i32) -> (i32, i32, i32, i32) {
    %c0_i32 = arith.constant 0 : i32
    %c0_i32_0 = arith.constant 0 : i32
    %c0_i32_1 = arith.constant 0 : i32
    %c0_i32_2 = arith.constant 0 : i32
    return %arg0, %c0_i32, %c0_i32_0, %c0_i32_1 : i32, i32, i32, i32
  }
  func.func @transform_2(%arg0: i32) -> (i32, i32, i32, i32) {
    %c0_i32 = arith.constant 0 : i32
    %c0_i32_0 = arith.constant 0 : i32
    %c0_i32_1 = arith.constant 0 : i32
    %c0_i32_2 = arith.constant 0 : i32
    return %arg0, %c0_i32, %c0_i32_0, %c0_i32_1 : i32, i32, i32, i32
  }
}

</mosaic_0001>

<llo_original>
// kernel: augmenter_forward.1
$region0: #{augmenter_forward.1}
  #allocation0 [shape = 'u32[]', space=smem, size = 0x4, offset = 0x4, fixed_abs, tag = 'smem constant byte address 0x4 - core index']
  #allocation1 [shape = 'u32[72,128]{1,0:T(1,128)}', space=vmem, size = 0x9000, scoped, tag = 'internal scratch']
  %s0 = inlined_call_operand.vmem [shape: f32[2,8], index: 0, kind: input, shape index: {}]
  %s1 = inlined_call_operand.hbm [shape: f32[2,1,64,128], index: 1, kind: input, shape index: {}]
  %s2 = inlined_call_operand.hbm [shape: f32[2,1,64,128], index: 2, kind: output, shape index: {}]
  %s3 = sld [smem:[#allocation0]]
  $region57: #{augmenter_forward.1} parent=0
    _
  %s5 = ssub.s32 1, %s3
  %s6 = scalar_select 0, %s5, %s3
  $region1: #{augmenter_forward.1} parent=0
    #allocation2 [shape = 'u8[1024]{0}', space=smem, size = 0x400, scoped, tag = 'input window, operand 0, single buffered']
    #allocation3 [shape = 's32[2]{0}', space=sflag, size = 0x8, scoped, tag = 'scoped memory for augmenter_forward.1']
    #allocation4 [shape = 's32[2]{0}', space=sflag, size = 0x8, scoped, tag = 'scoped memory for augmenter_forward.1']
    #allocation5 [shape = 's32[2]{0}', space=sflag, size = 0x8, scoped, tag = 'scoped memory for augmenter_forward.1']
    #allocation6 [shape = 'u8[65536]{0}', space=vmem, size = 0x10000, scoped, tag = 'input window, operand 1']
    #allocation7 [shape = 'u8[65536]{0}', space=vmem, size = 0x10000, scoped, tag = 'output window, operand 0']
    %7 = vsyncpa [#allocation5], 0
    %8 = vsyncpa [#allocation3], 0
    %s9 = scalar_lea.sflag [#allocation3], 1
    %10 = vsyncpa %s9, 0
    %11 = vsyncpa [#allocation4], 0
    %s12 = scalar_lea.sflag [#allocation4], 1
    %13 = vsyncpa %s12, 0
    loop: start=0, step=1, limit=4
    $region2: #{augmenter_forward.1} parent=1 // loop_pre_header
      _
    $region3: #{augmenter_forward.1} parent=1 // loop_header
      %s15 = sphi 0, %s19
      %p16 = scmp.ge.s32.totalorder %s15, 4
      %s23 = sphi 0, %s23
      %s25 = sphi 0, %s23
      %s26 = sphi 0, %s25
      %s40 = sphi 0, %s26
      %s46 = sphi 0, %s48
      %s49 = sphi 0, %s46
      %s50 = sphi 0, %s49
      %s66 = sphi 0, %s50
      %s72 = sphi 0, %s74
      %s75 = sphi 0, %s72
      %s76 = sphi 0, %s75
      %s92 = sphi 0, %s76
    $region4: #{augmenter_forward.1} parent=1 // loop_header_branch
      %18 = sbr.rel (%p16) target = $region8
    $region5: #{augmenter_forward.1} parent=1 // loop_body
      %s20 = ssub.s32 %s15, 1
      %s21 = ssub.s32 %s15, 2
      %s22 = sadd.s32 %s15, 1
      %s24 = sadd.s32 %s23, 1
      %p27 = scmp.eq.s32.totalorder %s15, 1
      %p28 = scmp.ne.s32.totalorder %s23, %s25
      %p29 = scmp.eq.s32.totalorder %s15, 0
      %p30 = por %p28, %p29
      %p31 = scmp.ne.s32.totalorder %s23, %s25
      %p32 = scmp.eq.s32.totalorder %s20, 1
      %p33 = por %p31, %p32
      %p34 = scmp.ne.s32.totalorder %s25, %s26
      %p35 = scmp.eq.s32.totalorder %s20, 0
      %p36 = por %p34, %p35
      %p37 = scmp.ne.s32.totalorder %s25, %s26
      %p38 = scmp.eq.s32.totalorder %s21, 1
      %p39 = por %p37, %p38
      %p41 = scmp.ne.s32.totalorder %s26, %s40
      %p42 = scmp.eq.s32.totalorder %s21, 0
      %p43 = por %p41, %p42
      %s44 = ssub.s32 %s15, %s22
      %p45 = scmp.eq.s32.totalorder %s44, 0
      %s47 = sadd.s32 %s46, 1
      %s48 = scalar_select %p45, %s46, %s47
      %p51 = pneg %p45
      %p52 = scmp.eq.s32.totalorder %s15, 1
      %p53 = por %p51, %p52
      %p54 = scmp.ne.s32.totalorder %s46, %s49
      %p55 = scmp.eq.s32.totalorder %s15, 0
      %p56 = por %p54, %p55
      %p57 = scmp.ne.s32.totalorder %s46, %s49
      %p58 = scmp.eq.s32.totalorder %s20, 1
      %p59 = por %p57, %p58
      %p60 = scmp.ne.s32.totalorder %s49, %s50
      %p61 = scmp.eq.s32.totalorder %s20, 0
      %p62 = por %p60, %p61
      %p63 = scmp.ne.s32.totalorder %s49, %s50
      %p64 = scmp.eq.s32.totalorder %s21, 1
      %p65 = por %p63, %p64
      %p67 = scmp.ne.s32.totalorder %s50, %s66
      %p68 = scmp.eq.s32.totalorder %s21, 0
      %p69 = por %p67, %p68
      %s70 = ssub.s32 %s15, %s22
      %p71 = scmp.eq.s32.totalorder %s70, 0
      %s73 = sadd.s32 %s72, 1
      %s74 = scalar_select %p71, %s72, %s73
      %p77 = pneg %p71
      %p78 = scmp.eq.s32.totalorder %s15, 1
      %p79 = por %p77, %p78
      %p80 = scmp.ne.s32.totalorder %s72, %s75
      %p81 = scmp.eq.s32.totalorder %s15, 0
      %p82 = por %p80, %p81
      %p83 = scmp.ne.s32.totalorder %s72, %s75
      %p84 = scmp.eq.s32.totalorder %s20, 1
      %p85 = por %p83, %p84
      %p86 = scmp.ne.s32.totalorder %s75, %s76
      %p87 = scmp.eq.s32.totalorder %s20, 0
      %p88 = por %p86, %p87
      %p89 = scmp.ne.s32.totalorder %s75, %s76
      %p90 = scmp.eq.s32.totalorder %s21, 1
      %p91 = por %p89, %p90
      %p93 = scmp.ne.s32.totalorder %s76, %s92
      %p94 = scmp.eq.s32.totalorder %s21, 0
      %p95 = por %p93, %p94
      %p96 = scmp.le.s32.totalorder 1, %s15
      %p97 = scmp.lt.s32.totalorder %s15, 3
      %p98 = pnand %p96, %p97
      %p99 = pneg %p98
      // Predicated region
      $region9: #{augmenter_forward.1} parent=5 // pred_check
        _
      $region10: #{augmenter_forward.1} parent=5 // pred_check_branch
        %101 = sbr.rel (%p98) target = $region12
      $region11: #{augmenter_forward.1} parent=5 // pred_region
        %s102 = ssub.s32 %s15, 1
        // Predicated region
        $region13: #{augmenter_forward.1} parent=11 // pred_check
          %p103 = pneg %p36
        $region14: #{augmenter_forward.1} parent=11 // pred_check_branch
          %105 = sbr.rel (%p103) target = $region16
        $region15: #{augmenter_forward.1} parent=11 // pred_region
          %107 = vsyncadd [#allocation5], 0
          %s109 = sshll.u32 %s0, 4
          %s110 = int_to_ptr.vmem [resolvable:$true] %s109
          %112 = dma.vmem_to_smem %s110, 32, [#allocation2], [#allocation5]
        $region16: #{augmenter_forward.1} parent=11 // pred_fallthru
          _
      $region12: #{augmenter_forward.1} parent=5 // pred_fallthru
        _
      %p113 = scmp.lt.s32.totalorder %s15, 2
      // Predicated region
      $region17: #{augmenter_forward.1} parent=5 // pred_check
        %p114 = pneg %p113
      $region18: #{augmenter_forward.1} parent=5 // pred_check_branch
        %116 = sbr.rel (%p114) target = $region20
      $region19: #{augmenter_forward.1} parent=5 // pred_region
        // Predicated region
        $region21: #{augmenter_forward.1} parent=19 // pred_check
          %p117 = pneg %p56
        $region22: #{augmenter_forward.1} parent=19 // pred_check_branch
          %119 = sbr.rel (%p117) target = $region24
        $region23: #{augmenter_forward.1} parent=19 // pred_region
          %s120 = sand.u32 %s46, 1
          %s121 = scalar_lea.sflag [#allocation3], %s120
          %s122 = sand.u32 %s46, 1
          %s123 = smul.addr %s122, 64
          %s124 = scalar_lea.vmem [#allocation6], %s123
          %126 = vsyncadd %s121, 0
          %s127 = smul.addr %s15, 8
          %s128 = smul.addr %s127, 8
          %s129 = scalar_lea.hbm %s1, %s128
          %s130 = sshll.u32 %s129, 4
          %s131 = int_to_ptr.hbm [resolvable:$true] %s130
          %s132 = sshll.u32 %s124, 4
          %s133 = int_to_ptr.vmem [resolvable:$true] %s132
          %138 = dma.hbm_to_vmem [thread:$0]  %s131, 1024, %s133, %s121, 128, 128, 8
        $region24: #{augmenter_forward.1} parent=19 // pred_fallthru
          _
      $region20: #{augmenter_forward.1} parent=5 // pred_fallthru
        _
      %p139 = scmp.le.s32.totalorder 1, %s15
      %p140 = scmp.lt.s32.totalorder %s15, 3
      %p141 = pnand %p139, %p140
      %p142 = pneg %p141
      // Predicated region
      $region25: #{augmenter_forward.1} parent=5 // pred_check
        _
      $region26: #{augmenter_forward.1} parent=5 // pred_check_branch
        %144 = sbr.rel (%p141) target = $region28
      $region27: #{augmenter_forward.1} parent=5 // pred_region
        %s145 = ssub.s32 %s15, 1
        // Predicated region
        $region29: #{augmenter_forward.1} parent=27 // pred_check
          %p146 = pneg %p36
        $region30: #{augmenter_forward.1} parent=27 // pred_check_branch
          %148 = sbr.rel (%p146) target = $region32
        $region31: #{augmenter_forward.1} parent=27 // pred_region
          %150 = dma.done [#allocation5], 32
        $region32: #{augmenter_forward.1} parent=27 // pred_fallthru
          _
        %s151 = sand.u32 %s49, 1
        %s152 = scalar_lea.sflag [#allocation3], %s151
        %s153 = sand.u32 %s49, 1
        %s154 = smul.addr %s153, 64
        %s155 = scalar_lea.vmem [#allocation6], %s154
        // Predicated region
        $region33: #{augmenter_forward.1} parent=27 // pred_check
          %p156 = pneg %p62
        $region34: #{augmenter_forward.1} parent=27 // pred_check_branch
          %158 = sbr.rel (%p156) target = $region36
        $region35: #{augmenter_forward.1} parent=27 // pred_region
          %160 = dma.done %s152, 1024
        $region36: #{augmenter_forward.1} parent=27 // pred_fallthru
          _
        %161 = sfence
        %p162 = pneg %p36
        %p163 = pneg %p33
        %s164 = sand.u32 %s49, 1
        %s165 = scalar_lea.sflag [#allocation3], %s164
        %s166 = sand.u32 %s49, 1
        %s167 = smul.addr %s166, 64
        %s168 = scalar_lea.vmem [#allocation6], %s167
        %p169 = pneg %p62
        %p170 = pneg %p59
        %p171 = pneg %p88
        %p172 = pneg %p85
        %s173 = sand.u32 %s75, 1
        %s174 = scalar_lea.sflag [#allocation4], %s173
        %s175 = sand.u32 %s75, 1
        %s176 = smul.addr %s175, 64
        %s177 = scalar_lea.vmem [#allocation7], %s176
        %s178 = smul.u32 %s20, 128
        %s179 = sld [smem:[#allocation2 + %s178]]
        %s180 = sadd.s32 %s178, 1
        %s181 = sld [smem:[#allocation2 + %s180]]
        %s182 = sadd.s32 %s178, 2
        %s183 = sld [smem:[#allocation2 + %s182]]
        %s184 = sadd.s32 %s178, 6
        %s185 = sld [smem:[#allocation2 + %s184]]
        %v186 = vlaneseq
        %v187 = vshrl.u32 %v186, 7
        %v188 = vadd.s32 %v187, 8
        %v189 = vadd.s32 %v187, 16
        %v190 = vadd.s32 %v187, 24
        %v191 = vadd.s32 %v187, 32
        %v192 = vadd.s32 %v187, 40
        %v193 = vadd.s32 %v187, 48
        %v194 = vadd.s32 %v187, 56
        %v195 = vlaneseq
        %v196 = vand.u32 %v195, 127
        %vm197 = vcmp.eq.s32.totalorder %v187, 0
        %vm198 = vcmp.eq.s32.totalorder %v188, 0
        %vm199 = vcmp.eq.s32.totalorder %v189, 0
        %vm200 = vcmp.eq.s32.totalorder %v190, 0
        %vm201 = vcmp.eq.s32.totalorder %v191, 0
        %vm202 = vcmp.eq.s32.totalorder %v192, 0
        %vm203 = vcmp.eq.s32.totalorder %v193, 0
        %vm204 = vcmp.eq.s32.totalorder %v194, 0
        %vm205 = vcmp.eq.s32.totalorder %v187, 63
        %vm206 = vcmp.eq.s32.totalorder %v188, 63
        %vm207 = vcmp.eq.s32.totalorder %v189, 63
        %vm208 = vcmp.eq.s32.totalorder %v190, 63
        %vm209 = vcmp.eq.s32.totalorder %v191, 63
        %vm210 = vcmp.eq.s32.totalorder %v192, 63
        %vm211 = vcmp.eq.s32.totalorder %v193, 63
        %vm212 = vcmp.eq.s32.totalorder %v194, 63
        %vm213 = vcmp.eq.s32.totalorder %v196, 0
        %vm214 = vcmp.eq.s32.totalorder %v196, 127
        %vm215 = vmor %vm197, %vm205
        %vm216 = vmor %vm198, %vm206
        %vm217 = vmor %vm199, %vm207
        %vm218 = vmor %vm200, %vm208
        %vm219 = vmor %vm201, %vm209
        %vm220 = vmor %vm202, %vm210
        %vm221 = vmor %vm203, %vm211
        %vm222 = vmor %vm204, %vm212
        %vm223 = vmor %vm213, %vm214
        %vm224 = vmor %vm215, %vm223
        %vm225 = vmor %vm216, %vm223
        %vm226 = vmor %vm217, %vm223
        %vm227 = vmor %vm218, %vm223
        %vm228 = vmor %vm219, %vm223
        %vm229 = vmor %vm220, %vm223
        %vm230 = vmor %vm221, %vm223
        %vm231 = vmor %vm222, %vm223
        %vm232 = vmxor %vm224, 1
        %vm233 = vmxor %vm225, 1
        %vm234 = vmxor %vm226, 1
        %vm235 = vmxor %vm227, 1
        %vm236 = vmxor %vm228, 1
        %vm237 = vmxor %vm229, 1
        %vm238 = vmxor %vm230, 1
        %vm239 = vmxor %vm231, 1
        %v240 = vld [vmem:[%s155] sm:$0xff]
        %v241 = vld [vmem:[%s155 + $0x8] sm:$0xff]
        %v242 = vld [vmem:[%s155 + $0x10] sm:$0xff]
        %v243 = vld [vmem:[%s155 + $0x18] sm:$0xff]
        %v244 = vld [vmem:[%s155 + $0x20] sm:$0xff]
        %v245 = vld [vmem:[%s155 + $0x28] sm:$0xff]
        %v246 = vld [vmem:[%s155 + $0x30] sm:$0xff]
        %v247 = vld [vmem:[%s155 + $0x38] sm:$0xff]
        %p248 = scmp.gt.f32.partialorder %s179, 0.5
        %v249 = vsub.f32 1.0, %v240
        %v250 = vsub.f32 1.0, %v241
        %v251 = vsub.f32 1.0, %v242
        %v252 = vsub.f32 1.0, %v243
        %v253 = vsub.f32 1.0, %v244
        %v254 = vsub.f32 1.0, %v245
        %v255 = vsub.f32 1.0, %v246
        %v256 = vsub.f32 1.0, %v247
        %s257 = scalar_select %p248, 1, 0
        %v258 = vstv %s257
        %vm259 = vcmp.eq.s32.totalorder %v258, 1
        %v260 = vsel %vm259, %v249, %v240
        %v261 = vsel %vm259, %v250, %v241
        %v262 = vsel %vm259, %v251, %v242
        %v263 = vsel %vm259, %v252, %v243
        %v264 = vsel %vm259, %v253, %v244
        %v265 = vsel %vm259, %v254, %v245
        %v266 = vsel %vm259, %v255, %v246
        %v267 = vsel %vm259, %v256, %v247
        %268 = vst [vmem:[%s177] sm:$0xff] %v260
        %269 = vst [vmem:[%s177 + $0x8] sm:$0xff] %v261
        %270 = vst [vmem:[%s177 + $0x10] sm:$0xff] %v262
        %271 = vst [vmem:[%s177 + $0x18] sm:$0xff] %v263
        %272 = vst [vmem:[%s177 + $0x20] sm:$0xff] %v264
        %273 = vst [vmem:[%s177 + $0x28] sm:$0xff] %v265
        %274 = vst [vmem:[%s177 + $0x30] sm:$0xff] %v266
        %275 = vst [vmem:[%s177 + $0x38] sm:$0xff] %v267
        %p276 = scmp.gt.f32.partialorder %s181, 0.5
        // Predicated region
        $region37: #{augmenter_forward.1} parent=27 // pred_check
          %p277 = pneg %p276
        $region38: #{augmenter_forward.1} parent=27 // pred_check_branch
          %279 = sbr.rel (%p277) target = $region40
        $region39: #{augmenter_forward.1} parent=27 // pred_region
          %v280 = vld [vmem:[%s177] sm:$0xff]
          %v281 = vld [vmem:[%s177 + $0x8] sm:$0xff]
          %v282 = vld [vmem:[%s177 + $0x10] sm:$0xff]
          %v283 = vld [vmem:[%s177 + $0x18] sm:$0xff]
          %v284 = vld [vmem:[%s177 + $0x20] sm:$0xff]
          %v285 = vld [vmem:[%s177 + $0x28] sm:$0xff]
          %v286 = vld [vmem:[%s177 + $0x30] sm:$0xff]
          %v287 = vld [vmem:[%s177 + $0x38] sm:$0xff]
          %v289 = vrot.slane %v287, 7
          %vm298 = vcmask 1040384
          %v299 = vrot.slane %v280, 7
          %v300 = vrot.slane %v281, 7
          %v301 = vsel %vm298, %v299, %v300
          %v302 = vrot.slane %v282, 7
          %v303 = vsel %vm298, %v300, %v302
          %v304 = vrot.slane %v283, 7
          %v305 = vsel %vm298, %v302, %v304
          %v306 = vrot.slane %v284, 7
          %v307 = vsel %vm298, %v304, %v306
          %v308 = vrot.slane %v285, 7
          %v309 = vsel %vm298, %v306, %v308
          %v310 = vrot.slane %v286, 7
          %v311 = vsel %vm298, %v308, %v310
          %v312 = vsel %vm298, %v310, %v289
          %v321 = vsel %vm298, %v289, %v299
          %v322 = vsel %vm197, %v280, %v321
          %v323 = vsel %vm198, %v281, %v301
          %v324 = vsel %vm199, %v282, %v303
          %v325 = vsel %vm200, %v283, %v305
          %v326 = vsel %vm201, %v284, %v307
          %v327 = vsel %vm202, %v285, %v309
          %v328 = vsel %vm203, %v286, %v311
          %v329 = vsel %vm204, %v287, %v312
          %v330 = vadd.f32 %v322, %v280
          %v331 = vadd.f32 %v323, %v281
          %v332 = vadd.f32 %v324, %v282
          %v333 = vadd.f32 %v325, %v283
          %v334 = vadd.f32 %v326, %v284
          %v335 = vadd.f32 %v327, %v285
          %v336 = vadd.f32 %v328, %v286
          %v337 = vadd.f32 %v329, %v287
          %vm338 = vcmask 1046528
          %v339 = vrot.slane %v280, 1
          %v340 = vrot.slane %v281, 1
          %v341 = vsel %vm338, %v339, %v340
          %v342 = vrot.slane %v282, 1
          %v343 = vsel %vm338, %v340, %v342
          %v344 = vrot.slane %v283, 1
          %v345 = vsel %vm338, %v342, %v344
          %v346 = vrot.slane %v284, 1
          %v347 = vsel %vm338, %v344, %v346
          %v348 = vrot.slane %v285, 1
          %v349 = vsel %vm338, %v346, %v348
          %v350 = vrot.slane %v286, 1
          %v351 = vsel %vm338, %v348, %v350
          %v352 = vrot.slane %v287, 1
          %v353 = vsel %vm338, %v350, %v352
          %v363 = vsel %vm338, %v352, %v339
          %v364 = vsel %vm205, %v280, %v341
          %v365 = vsel %vm206, %v281, %v343
          %v366 = vsel %vm207, %v282, %v345
          %v367 = vsel %vm208, %v283, %v347
          %v368 = vsel %vm209, %v284, %v349
          %v369 = vsel %vm210, %v285, %v351
          %v370 = vsel %vm211, %v286, %v353
          %v371 = vsel %vm212, %v287, %v363
          %v372 = vadd.f32 %v330, %v364
          %v373 = vadd.f32 %v331, %v365
          %v374 = vadd.f32 %v332, %v366
          %v375 = vadd.f32 %v333, %v367
          %v376 = vadd.f32 %v334, %v368
          %v377 = vadd.f32 %v335, %v369
          %v378 = vadd.f32 %v336, %v370
          %v379 = vadd.f32 %v337, %v371
          %388 = vrot.lane.b32.xlu0 %v372, 1
          %v389 = vpop.permute.xlu0 %388
          %390 = vrot.lane.b32.xlu0 %v373, 1
          %v391 = vpop.permute.xlu0 %390
          %392 = vrot.lane.b32.xlu0 %v374, 1
          %v393 = vpop.permute.xlu0 %392
          %394 = vrot.lane.b32.xlu0 %v375, 1
          %v395 = vpop.permute.xlu0 %394
          %396 = vrot.lane.b32.xlu0 %v376, 1
          %v397 = vpop.permute.xlu0 %396
          %398 = vrot.lane.b32.xlu0 %v377, 1
          %v399 = vpop.permute.xlu0 %398
          %400 = vrot.lane.b32.xlu0 %v378, 1
          %v401 = vpop.permute.xlu0 %400
          %402 = vrot.lane.b32.xlu0 %v379, 1
          %v403 = vpop.permute.xlu0 %402
          %v412 = vsel %vm213, %v372, %v389
          %v413 = vsel %vm213, %v373, %v391
          %v414 = vsel %vm213, %v374, %v393
          %v415 = vsel %vm213, %v375, %v395
          %v416 = vsel %vm213, %v376, %v397
          %v417 = vsel %vm213, %v377, %v399
          %v418 = vsel %vm213, %v378, %v401
          %v419 = vsel %vm213, %v379, %v403
          %v420 = vadd.f32 %v412, %v372
          %v421 = vadd.f32 %v413, %v373
          %v422 = vadd.f32 %v414, %v374
          %v423 = vadd.f32 %v415, %v375
          %v424 = vadd.f32 %v416, %v376
          %v425 = vadd.f32 %v417, %v377
          %v426 = vadd.f32 %v418, %v378
          %v427 = vadd.f32 %v419, %v379
          %428 = vrot.lane.b32.xlu0 %v372, 127
          %v429 = vpop.permute.xlu0 %428
          %430 = vrot.lane.b32.xlu0 %v373, 127
          %v431 = vpop.permute.xlu0 %430
          %432 = vrot.lane.b32.xlu0 %v374, 127
          %v433 = vpop.permute.xlu0 %432
          %434 = vrot.lane.b32.xlu0 %v375, 127
          %v435 = vpop.permute.xlu0 %434
          %436 = vrot.lane.b32.xlu0 %v376, 127
          %v437 = vpop.permute.xlu0 %436
          %438 = vrot.lane.b32.xlu0 %v377, 127
          %v439 = vpop.permute.xlu0 %438
          %440 = vrot.lane.b32.xlu0 %v378, 127
          %v441 = vpop.permute.xlu0 %440
          %442 = vrot.lane.b32.xlu0 %v379, 127
          %v443 = vpop.permute.xlu0 %442
          %v452 = vsel %vm214, %v372, %v429
          %v453 = vsel %vm214, %v373, %v431
          %v454 = vsel %vm214, %v374, %v433
          %v455 = vsel %vm214, %v375, %v435
          %v456 = vsel %vm214, %v376, %v437
          %v457 = vsel %vm214, %v377, %v439
          %v458 = vsel %vm214, %v378, %v441
          %v459 = vsel %vm214, %v379, %v443
          %v460 = vadd.f32 %v420, %v452
          %v461 = vadd.f32 %v421, %v453
          %v462 = vadd.f32 %v422, %v454
          %v463 = vadd.f32 %v423, %v455
          %v464 = vadd.f32 %v424, %v456
          %v465 = vadd.f32 %v425, %v457
          %v466 = vadd.f32 %v426, %v458
          %v467 = vadd.f32 %v427, %v459
          %v468 = vmul.f32 %v280, 4.0
          %v469 = vmul.f32 %v281, 4.0
          %v470 = vmul.f32 %v282, 4.0
          %v471 = vmul.f32 %v283, 4.0
          %v472 = vmul.f32 %v284, 4.0
          %v473 = vmul.f32 %v285, 4.0
          %v474 = vmul.f32 %v286, 4.0
          %v475 = vmul.f32 %v287, 4.0
          %v476 = vadd.f32 %v460, %v468
          %v477 = vadd.f32 %v461, %v469
          %v478 = vadd.f32 %v462, %v470
          %v479 = vadd.f32 %v463, %v471
          %v480 = vadd.f32 %v464, %v472
          %v481 = vadd.f32 %v465, %v473
          %v482 = vadd.f32 %v466, %v474
          %v483 = vadd.f32 %v467, %v475
          %v484 = vmul.f32 %v476, 0.07692308
          %v485 = vmul.f32 %v477, 0.07692308
          %v486 = vmul.f32 %v478, 0.07692308
          %v487 = vmul.f32 %v479, 0.07692308
          %v488 = vmul.f32 %v480, 0.07692308
          %v489 = vmul.f32 %v481, 0.07692308
          %v490 = vmul.f32 %v482, 0.07692308
          %v491 = vmul.f32 %v483, 0.07692308
          %v492 = vmax.f32 %v484, 0.0
          %v493 = vmax.f32 %v485, 0.0
          %v494 = vmax.f32 %v486, 0.0
          %v495 = vmax.f32 %v487, 0.0
          %v496 = vmax.f32 %v488, 0.0
          %v497 = vmax.f32 %v489, 0.0
          %v498 = vmax.f32 %v490, 0.0
          %v499 = vmax.f32 %v491, 0.0
          %v500 = vmin.f32 %v492, 1.0
          %v501 = vmin.f32 %v493, 1.0
          %v502 = vmin.f32 %v494, 1.0
          %v503 = vmin.f32 %v495, 1.0
          %v504 = vmin.f32 %v496, 1.0
          %v505 = vmin.f32 %v497, 1.0
          %v506 = vmin.f32 %v498, 1.0
          %v507 = vmin.f32 %v499, 1.0
          %v508 = vsub.f32 %v500, %v280
          %v509 = vsub.f32 %v501, %v281
          %v510 = vsub.f32 %v502, %v282
          %v511 = vsub.f32 %v503, %v283
          %v512 = vsub.f32 %v504, %v284
          %v513 = vsub.f32 %v505, %v285
          %v514 = vsub.f32 %v506, %v286
          %v515 = vsub.f32 %v507, %v287
          %v516 = vstv %s185
          %v517 = vmul.f32 %v516, %v508
          %v518 = vmul.f32 %v516, %v509
          %v519 = vmul.f32 %v516, %v510
          %v520 = vmul.f32 %v516, %v511
          %v521 = vmul.f32 %v516, %v512
          %v522 = vmul.f32 %v516, %v513
          %v523 = vmul.f32 %v516, %v514
          %v524 = vmul.f32 %v516, %v515
          %v525 = vadd.f32 %v280, %v517
          %v526 = vadd.f32 %v281, %v518
          %v527 = vadd.f32 %v282, %v519
          %v528 = vadd.f32 %v283, %v520
          %v529 = vadd.f32 %v284, %v521
          %v530 = vadd.f32 %v285, %v522
          %v531 = vadd.f32 %v286, %v523
          %v532 = vadd.f32 %v287, %v524
          %v533 = vsel %vm232, %v525, %v280
          %v534 = vsel %vm233, %v526, %v281
          %v535 = vsel %vm234, %v527, %v282
          %v536 = vsel %vm235, %v528, %v283
          %v537 = vsel %vm236, %v529, %v284
          %v538 = vsel %vm237, %v530, %v285
          %v539 = vsel %vm238, %v531, %v286
          %v540 = vsel %vm239, %v532, %v287
          %541 = vst [vmem:[%s177] sm:$0xff] %v533
          %542 = vst [vmem:[%s177 + $0x8] sm:$0xff] %v534
          %543 = vst [vmem:[%s177 + $0x10] sm:$0xff] %v535
          %544 = vst [vmem:[%s177 + $0x18] sm:$0xff] %v536
          %545 = vst [vmem:[%s177 + $0x20] sm:$0xff] %v537
          %546 = vst [vmem:[%s177 + $0x28] sm:$0xff] %v538
          %547 = vst [vmem:[%s177 + $0x30] sm:$0xff] %v539
          %548 = vst [vmem:[%s177 + $0x38] sm:$0xff] %v540
        $region40: #{augmenter_forward.1} parent=27 // pred_fallthru
          _
        %p549 = scmp.gt.f32.partialorder %s183, 0.5
        // Predicated region
        $region41: #{augmenter_forward.1} parent=27 // pred_check
          %p550 = pneg %p549
        $region42: #{augmenter_forward.1} parent=27 // pred_check_branch
          %552 = sbr.rel (%p550) target = $region44
        $region43: #{augmenter_forward.1} parent=27 // pred_region
          %v553 = vld [vmem:[%s177] sm:$0xff]
          %v554 = vld [vmem:[%s177 + $0x8] sm:$0xff]
          %v555 = vld [vmem:[%s177 + $0x10] sm:$0xff]
          %v556 = vld [vmem:[%s177 + $0x18] sm:$0xff]
          %v557 = vld [vmem:[%s177 + $0x20] sm:$0xff]
          %v558 = vld [vmem:[%s177 + $0x28] sm:$0xff]
          %v559 = vld [vmem:[%s177 + $0x30] sm:$0xff]
          %v560 = vld [vmem:[%s177 + $0x38] sm:$0xff]
          %v562 = vrot.slane %v560, 7
          %vm571 = vcmask 1040384
          %v572 = vrot.slane %v553, 7
          %v573 = vrot.slane %v554, 7
          %v574 = vsel %vm571, %v572, %v573
          %v575 = vrot.slane %v555, 7
          %v576 = vsel %vm571, %v573, %v575
          %v577 = vrot.slane %v556, 7
          %v578 = vsel %vm571, %v575, %v577
          %v579 = vrot.slane %v557, 7
          %v580 = vsel %vm571, %v577, %v579
          %v581 = vrot.slane %v558, 7
          %v582 = vsel %vm571, %v579, %v581
          %v583 = vrot.slane %v559, 7
          %v584 = vsel %vm571, %v581, %v583
          %v585 = vsel %vm571, %v583, %v562
          %v594 = vsel %vm571, %v562, %v572
          %v595 = vsel %vm197, 0.0, %v594
          %v596 = vsel %vm198, 0.0, %v574
          %v597 = vsel %vm199, 0.0, %v576
          %v598 = vsel %vm200, 0.0, %v578
          %v599 = vsel %vm201, 0.0, %v580
          %v600 = vsel %vm202, 0.0, %v582
          %v601 = vsel %vm203, 0.0, %v584
          %v602 = vsel %vm204, 0.0, %v585
          %vm603 = vcmask 1046528
          %v604 = vrot.slane %v553, 1
          %v605 = vrot.slane %v554, 1
          %v606 = vsel %vm603, %v604, %v605
          %v607 = vrot.slane %v555, 1
          %v608 = vsel %vm603, %v605, %v607
          %v609 = vrot.slane %v556, 1
          %v610 = vsel %vm603, %v607, %v609
          %v611 = vrot.slane %v557, 1
          %v612 = vsel %vm603, %v609, %v611
          %v613 = vrot.slane %v558, 1
          %v614 = vsel %vm603, %v611, %v613
          %v615 = vrot.slane %v559, 1
          %v616 = vsel %vm603, %v613, %v615
          %v617 = vrot.slane %v560, 1
          %v618 = vsel %vm603, %v615, %v617
          %v628 = vsel %vm603, %v617, %v604
          %v629 = vsel %vm205, 0.0, %v606
          %v630 = vsel %vm206, 0.0, %v608
          %v631 = vsel %vm207, 0.0, %v610
          %v632 = vsel %vm208, 0.0, %v612
          %v633 = vsel %vm209, 0.0, %v614
          %v634 = vsel %vm210, 0.0, %v616
          %v635 = vsel %vm211, 0.0, %v618
          %v636 = vsel %vm212, 0.0, %v628
          %645 = vrot.lane.b32.xlu0 %v595, 1
          %v646 = vpop.permute.xlu0 %645
          %647 = vrot.lane.b32.xlu0 %v596, 1
          %v648 = vpop.permute.xlu0 %647
          %649 = vrot.lane.b32.xlu0 %v597, 1
          %v650 = vpop.permute.xlu0 %649
          %651 = vrot.lane.b32.xlu0 %v598, 1
          %v652 = vpop.permute.xlu0 %651
          %653 = vrot.lane.b32.xlu0 %v599, 1
          %v654 = vpop.permute.xlu0 %653
          %655 = vrot.lane.b32.xlu0 %v600, 1
          %v656 = vpop.permute.xlu0 %655
          %657 = vrot.lane.b32.xlu0 %v601, 1
          %v658 = vpop.permute.xlu0 %657
          %659 = vrot.lane.b32.xlu0 %v602, 1
          %v660 = vpop.permute.xlu0 %659
          %v669 = vsel %vm213, 0.0, %v646
          %v670 = vsel %vm213, 0.0, %v648
          %v671 = vsel %vm213, 0.0, %v650
          %v672 = vsel %vm213, 0.0, %v652
          %v673 = vsel %vm213, 0.0, %v654
          %v674 = vsel %vm213, 0.0, %v656
          %v675 = vsel %vm213, 0.0, %v658
          %v676 = vsel %vm213, 0.0, %v660
          %677 = vrot.lane.b32.xlu0 %v595, 127
          %v678 = vpop.permute.xlu0 %677
          %679 = vrot.lane.b32.xlu0 %v596, 127
          %v680 = vpop.permute.xlu0 %679
          %681 = vrot.lane.b32.xlu0 %v597, 127
          %v682 = vpop.permute.xlu0 %681
          %683 = vrot.lane.b32.xlu0 %v598, 127
          %v684 = vpop.permute.xlu0 %683
          %685 = vrot.lane.b32.xlu0 %v599, 127
          %v686 = vpop.permute.xlu0 %685
          %687 = vrot.lane.b32.xlu0 %v600, 127
          %v688 = vpop.permute.xlu0 %687
          %689 = vrot.lane.b32.xlu0 %v601, 127
          %v690 = vpop.permute.xlu0 %689
          %691 = vrot.lane.b32.xlu0 %v602, 127
          %v692 = vpop.permute.xlu0 %691
          %v701 = vsel %vm214, 0.0, %v678
          %v702 = vsel %vm214, 0.0, %v680
          %v703 = vsel %vm214, 0.0, %v682
          %v704 = vsel %vm214, 0.0, %v684
          %v705 = vsel %vm214, 0.0, %v686
          %v706 = vsel %vm214, 0.0, %v688
          %v707 = vsel %vm214, 0.0, %v690
          %v708 = vsel %vm214, 0.0, %v692
          %709 = vrot.lane.b32.xlu0 %v553, 1
          %v710 = vpop.permute.xlu0 %709
          %711 = vrot.lane.b32.xlu0 %v554, 1
          %v712 = vpop.permute.xlu0 %711
          %713 = vrot.lane.b32.xlu0 %v555, 1
          %v714 = vpop.permute.xlu0 %713
          %715 = vrot.lane.b32.xlu0 %v556, 1
          %v716 = vpop.permute.xlu0 %715
          %717 = vrot.lane.b32.xlu0 %v557, 1
          %v718 = vpop.permute.xlu0 %717
          %719 = vrot.lane.b32.xlu0 %v558, 1
          %v720 = vpop.permute.xlu0 %719
          %721 = vrot.lane.b32.xlu0 %v559, 1
          %v722 = vpop.permute.xlu0 %721
          %723 = vrot.lane.b32.xlu0 %v560, 1
          %v724 = vpop.permute.xlu0 %723
          %v733 = vsel %vm213, 0.0, %v710
          %v734 = vsel %vm213, 0.0, %v712
          %v735 = vsel %vm213, 0.0, %v714
          %v736 = vsel %vm213, 0.0, %v716
          %v737 = vsel %vm213, 0.0, %v718
          %v738 = vsel %vm213, 0.0, %v720
          %v739 = vsel %vm213, 0.0, %v722
          %v740 = vsel %vm213, 0.0, %v724
          %741 = vrot.lane.b32.xlu0 %v553, 127
          %v742 = vpop.permute.xlu0 %741
          %743 = vrot.lane.b32.xlu0 %v554, 127
          %v744 = vpop.permute.xlu0 %743
          %745 = vrot.lane.b32.xlu0 %v555, 127
          %v746 = vpop.permute.xlu0 %745
          %747 = vrot.lane.b32.xlu0 %v556, 127
          %v748 = vpop.permute.xlu0 %747
          %749 = vrot.lane.b32.xlu0 %v557, 127
          %v750 = vpop.permute.xlu0 %749
          %751 = vrot.lane.b32.xlu0 %v558, 127
          %v752 = vpop.permute.xlu0 %751
          %753 = vrot.lane.b32.xlu0 %v559, 127
          %v754 = vpop.permute.xlu0 %753
          %755 = vrot.lane.b32.xlu0 %v560, 127
          %v756 = vpop.permute.xlu0 %755
          %v765 = vsel %vm214, 0.0, %v742
          %v766 = vsel %vm214, 0.0, %v744
          %v767 = vsel %vm214, 0.0, %v746
          %v768 = vsel %vm214, 0.0, %v748
          %v769 = vsel %vm214, 0.0, %v750
          %v770 = vsel %vm214, 0.0, %v752
          %v771 = vsel %vm214, 0.0, %v754
          %v772 = vsel %vm214, 0.0, %v756
          %781 = vrot.lane.b32.xlu0 %v629, 1
          %v782 = vpop.permute.xlu0 %781
          %783 = vrot.lane.b32.xlu0 %v630, 1
          %v784 = vpop.permute.xlu0 %783
          %785 = vrot.lane.b32.xlu0 %v631, 1
          %v786 = vpop.permute.xlu0 %785
          %787 = vrot.lane.b32.xlu0 %v632, 1
          %v788 = vpop.permute.xlu0 %787
          %789 = vrot.lane.b32.xlu0 %v633, 1
          %v790 = vpop.permute.xlu0 %789
          %791 = vrot.lane.b32.xlu0 %v634, 1
          %v792 = vpop.permute.xlu0 %791
          %793 = vrot.lane.b32.xlu0 %v635, 1
          %v794 = vpop.permute.xlu0 %793
          %795 = vrot.lane.b32.xlu0 %v636, 1
          %v796 = vpop.permute.xlu0 %795
          %v805 = vsel %vm213, 0.0, %v782
          %v806 = vsel %vm213, 0.0, %v784
          %v807 = vsel %vm213, 0.0, %v786
          %v808 = vsel %vm213, 0.0, %v788
          %v809 = vsel %vm213, 0.0, %v790
          %v810 = vsel %vm213, 0.0, %v792
          %v811 = vsel %vm213, 0.0, %v794
          %v812 = vsel %vm213, 0.0, %v796
          %813 = vrot.lane.b32.xlu0 %v629, 127
          %v814 = vpop.permute.xlu0 %813
          %815 = vrot.lane.b32.xlu0 %v630, 127
          %v816 = vpop.permute.xlu0 %815
          %817 = vrot.lane.b32.xlu0 %v631, 127
          %v818 = vpop.permute.xlu0 %817
          %819 = vrot.lane.b32.xlu0 %v632, 127
          %v820 = vpop.permute.xlu0 %819
          %821 = vrot.lane.b32.xlu0 %v633, 127
          %v822 = vpop.permute.xlu0 %821
          %823 = vrot.lane.b32.xlu0 %v634, 127
          %v824 = vpop.permute.xlu0 %823
          %825 = vrot.lane.b32.xlu0 %v635, 127
          %v826 = vpop.permute.xlu0 %825
          %827 = vrot.lane.b32.xlu0 %v636, 127
          %v828 = vpop.permute.xlu0 %827
          %v837 = vsel %vm214, 0.0, %v814
          %v838 = vsel %vm214, 0.0, %v816
          %v839 = vsel %vm214, 0.0, %v818
          %v840 = vsel %vm214, 0.0, %v820
          %v841 = vsel %vm214, 0.0, %v822
          %v842 = vsel %vm214, 0.0, %v824
          %v843 = vsel %vm214, 0.0, %v826
          %v844 = vsel %vm214, 0.0, %v828
          %v845 = vmin.f32 %v595, %v701
          %v846 = vmin.f32 %v596, %v702
          %v847 = vmin.f32 %v597, %v703
          %v848 = vmin.f32 %v598, %v704
          %v849 = vmin.f32 %v599, %v705
          %v850 = vmin.f32 %v600, %v706
          %v851 = vmin.f32 %v601, %v707
          %v852 = vmin.f32 %v602, %v708
          %v853 = vmax.f32 %v595, %v701
          %v854 = vmax.f32 %v596, %v702
          %v855 = vmax.f32 %v597, %v703
          %v856 = vmax.f32 %v598, %v704
          %v857 = vmax.f32 %v599, %v705
          %v858 = vmax.f32 %v600, %v706
          %v859 = vmax.f32 %v601, %v707
          %v860 = vmax.f32 %v602, %v708
          %v861 = vmin.f32 %v553, %v765
          %v862 = vmin.f32 %v554, %v766
          %v863 = vmin.f32 %v555, %v767
          %v864 = vmin.f32 %v556, %v768
          %v865 = vmin.f32 %v557, %v769
          %v866 = vmin.f32 %v558, %v770
          %v867 = vmin.f32 %v559, %v771
          %v868 = vmin.f32 %v560, %v772
          %v869 = vmax.f32 %v553, %v765
          %v870 = vmax.f32 %v554, %v766
          %v871 = vmax.f32 %v555, %v767
          %v872 = vmax.f32 %v556, %v768
          %v873 = vmax.f32 %v557, %v769
          %v874 = vmax.f32 %v558, %v770
          %v875 = vmax.f32 %v559, %v771
          %v876 = vmax.f32 %v560, %v772
          %v877 = vmin.f32 %v629, %v837
          %v878 = vmin.f32 %v630, %v838
          %v879 = vmin.f32 %v631, %v839
          %v880 = vmin.f32 %v632, %v840
          %v881 = vmin.f32 %v633, %v841
          %v882 = vmin.f32 %v634, %v842
          %v883 = vmin.f32 %v635, %v843
          %v884 = vmin.f32 %v636, %v844
          %v885 = vmax.f32 %v629, %v837
          %v886 = vmax.f32 %v630, %v838
          %v887 = vmax.f32 %v631, %v839
          %v888 = vmax.f32 %v632, %v840
          %v889 = vmax.f32 %v633, %v841
          %v890 = vmax.f32 %v634, %v842
          %v891 = vmax.f32 %v635, %v843
          %v892 = vmax.f32 %v636, %v844
          %v893 = vmin.f32 %v669, %v845
          %v894 = vmin.f32 %v670, %v846
          %v895 = vmin.f32 %v671, %v847
          %v896 = vmin.f32 %v672, %v848
          %v897 = vmin.f32 %v673, %v849
          %v898 = vmin.f32 %v674, %v850
          %v899 = vmin.f32 %v675, %v851
          %v900 = vmin.f32 %v676, %v852
          %v901 = vmax.f32 %v669, %v845
          %v902 = vmax.f32 %v670, %v846
          %v903 = vmax.f32 %v671, %v847
          %v904 = vmax.f32 %v672, %v848
          %v905 = vmax.f32 %v673, %v849
          %v906 = vmax.f32 %v674, %v850
          %v907 = vmax.f32 %v675, %v851
          %v908 = vmax.f32 %v676, %v852
          %v909 = vmin.f32 %v733, %v861
          %v910 = vmin.f32 %v734, %v862
          %v911 = vmin.f32 %v735, %v863
          %v912 = vmin.f32 %v736, %v864
          %v913 = vmin.f32 %v737, %v865
          %v914 = vmin.f32 %v738, %v866
          %v915 = vmin.f32 %v739, %v867
          %v916 = vmin.f32 %v740, %v868
          %v917 = vmax.f32 %v733, %v861
          %v918 = vmax.f32 %v734, %v862
          %v919 = vmax.f32 %v735, %v863
          %v920 = vmax.f32 %v736, %v864
          %v921 = vmax.f32 %v737, %v865
          %v922 = vmax.f32 %v738, %v866
          %v923 = vmax.f32 %v739, %v867
          %v924 = vmax.f32 %v740, %v868
          %v925 = vmin.f32 %v805, %v877
          %v926 = vmin.f32 %v806, %v878
          %v927 = vmin.f32 %v807, %v879
          %v928 = vmin.f32 %v808, %v880
          %v929 = vmin.f32 %v809, %v881
          %v930 = vmin.f32 %v810, %v882
          %v931 = vmin.f32 %v811, %v883
          %v932 = vmin.f32 %v812, %v884
          %v933 = vmax.f32 %v805, %v877
          %v934 = vmax.f32 %v806, %v878
          %v935 = vmax.f32 %v807, %v879
          %v936 = vmax.f32 %v808, %v880
          %v937 = vmax.f32 %v809, %v881
          %v938 = vmax.f32 %v810, %v882
          %v939 = vmax.f32 %v811, %v883
          %v940 = vmax.f32 %v812, %v884
          %v941 = vmin.f32 %v901, %v853
          %v942 = vmin.f32 %v902, %v854
          %v943 = vmin.f32 %v903, %v855
          %v944 = vmin.f32 %v904, %v856
          %v945 = vmin.f32 %v905, %v857
          %v946 = vmin.f32 %v906, %v858
          %v947 = vmin.f32 %v907, %v859
          %v948 = vmin.f32 %v908, %v860
          %v949 = vmax.f32 %v901, %v853
          %v950 = vmax.f32 %v902, %v854
          %v951 = vmax.f32 %v903, %v855
          %v952 = vmax.f32 %v904, %v856
          %v953 = vmax.f32 %v905, %v857
          %v954 = vmax.f32 %v906, %v858
          %v955 = vmax.f32 %v907, %v859
          %v956 = vmax.f32 %v908, %v860
          %v957 = vmin.f32 %v917, %v869
          %v958 = vmin.f32 %v918, %v870
          %v959 = vmin.f32 %v919, %v871
          %v960 = vmin.f32 %v920, %v872
          %v961 = vmin.f32 %v921, %v873
          %v962 = vmin.f32 %v922, %v874
          %v963 = vmin.f32 %v923, %v875
          %v964 = vmin.f32 %v924, %v876
          %v965 = vmax.f32 %v917, %v869
          %v966 = vmax.f32 %v918, %v870
          %v967 = vmax.f32 %v919, %v871
          %v968 = vmax.f32 %v920, %v872
          %v969 = vmax.f32 %v921, %v873
          %v970 = vmax.f32 %v922, %v874
          %v971 = vmax.f32 %v923, %v875
          %v972 = vmax.f32 %v924, %v876
          %v973 = vmin.f32 %v933, %v885
          %v974 = vmin.f32 %v934, %v886
          %v975 = vmin.f32 %v935, %v887
          %v976 = vmin.f32 %v936, %v888
          %v977 = vmin.f32 %v937, %v889
          %v978 = vmin.f32 %v938, %v890
          %v979 = vmin.f32 %v939, %v891
          %v980 = vmin.f32 %v940, %v892
          %v981 = vmax.f32 %v933, %v885
          %v982 = vmax.f32 %v934, %v886
          %v983 = vmax.f32 %v935, %v887
          %v984 = vmax.f32 %v936, %v888
          %v985 = vmax.f32 %v937, %v889
          %v986 = vmax.f32 %v938, %v890
          %v987 = vmax.f32 %v939, %v891
          %v988 = vmax.f32 %v940, %v892
          %v989 = vmax.f32 %v893, %v909
          %v990 = vmax.f32 %v894, %v910
          %v991 = vmax.f32 %v895, %v911
          %v992 = vmax.f32 %v896, %v912
          %v993 = vmax.f32 %v897, %v913
          %v994 = vmax.f32 %v898, %v914
          %v995 = vmax.f32 %v899, %v915
          %v996 = vmax.f32 %v900, %v916
          %v997 = vmin.f32 %v965, %v981
          %v998 = vmin.f32 %v966, %v982
          %v999 = vmin.f32 %v967, %v983
          %v1000 = vmin.f32 %v968, %v984
          %v1001 = vmin.f32 %v969, %v985
          %v1002 = vmin.f32 %v970, %v986
          %v1003 = vmin.f32 %v971, %v987
          %v1004 = vmin.f32 %v972, %v988
          %v1005 = vmin.f32 %v957, %v973
          %v1006 = vmin.f32 %v958, %v974
          %v1007 = vmin.f32 %v959, %v975
          %v1008 = vmin.f32 %v960, %v976
          %v1009 = vmin.f32 %v961, %v977
          %v1010 = vmin.f32 %v962, %v978
          %v1011 = vmin.f32 %v963, %v979
          %v1012 = vmin.f32 %v964, %v980
          %v1013 = vmax.f32 %v957, %v973
          %v1014 = vmax.f32 %v958, %v974
          %v1015 = vmax.f32 %v959, %v975
          %v1016 = vmax.f32 %v960, %v976
          %v1017 = vmax.f32 %v961, %v977
          %v1018 = vmax.f32 %v962, %v978
          %v1019 = vmax.f32 %v963, %v979
          %v1020 = vmax.f32 %v964, %v980
          %v1021 = vmax.f32 %v989, %v925
          %v1022 = vmax.f32 %v990, %v926
          %v1023 = vmax.f32 %v991, %v927
          %v1024 = vmax.f32 %v992, %v928
          %v1025 = vmax.f32 %v993, %v929
          %v1026 = vmax.f32 %v994, %v930
          %v1027 = vmax.f32 %v995, %v931
          %v1028 = vmax.f32 %v996, %v932
          %v1029 = vmax.f32 %v941, %v1005
          %v1030 = vmax.f32 %v942, %v1006
          %v1031 = vmax.f32 %v943, %v1007
          %v1032 = vmax.f32 %v944, %v1008
          %v1033 = vmax.f32 %v945, %v1009
          %v1034 = vmax.f32 %v946, %v1010
          %v1035 = vmax.f32 %v947, %v1011
          %v1036 = vmax.f32 %v948, %v1012
          %v1037 = vmin.f32 %v949, %v997
          %v1038 = vmin.f32 %v950, %v998
          %v1039 = vmin.f32 %v951, %v999
          %v1040 = vmin.f32 %v952, %v1000
          %v1041 = vmin.f32 %v953, %v1001
          %v1042 = vmin.f32 %v954, %v1002
          %v1043 = vmin.f32 %v955, %v1003
          %v1044 = vmin.f32 %v956, %v1004
          %v1045 = vmin.f32 %v1029, %v1013
          %v1046 = vmin.f32 %v1030, %v1014
          %v1047 = vmin.f32 %v1031, %v1015
          %v1048 = vmin.f32 %v1032, %v1016
          %v1049 = vmin.f32 %v1033, %v1017
          %v1050 = vmin.f32 %v1034, %v1018
          %v1051 = vmin.f32 %v1035, %v1019
          %v1052 = vmin.f32 %v1036, %v1020
          %v1053 = vmin.f32 %v1045, %v1037
          %v1054 = vmin.f32 %v1046, %v1038
          %v1055 = vmin.f32 %v1047, %v1039
          %v1056 = vmin.f32 %v1048, %v1040
          %v1057 = vmin.f32 %v1049, %v1041
          %v1058 = vmin.f32 %v1050, %v1042
          %v1059 = vmin.f32 %v1051, %v1043
          %v1060 = vmin.f32 %v1052, %v1044
          %v1061 = vmax.f32 %v1045, %v1037
          %v1062 = vmax.f32 %v1046, %v1038
          %v1063 = vmax.f32 %v1047, %v1039
          %v1064 = vmax.f32 %v1048, %v1040
          %v1065 = vmax.f32 %v1049, %v1041
          %v1066 = vmax.f32 %v1050, %v1042
          %v1067 = vmax.f32 %v1051, %v1043
          %v1068 = vmax.f32 %v1052, %v1044
          %v1069 = vmax.f32 %v1021, %v1053
          %v1070 = vmax.f32 %v1022, %v1054
          %v1071 = vmax.f32 %v1023, %v1055
          %v1072 = vmax.f32 %v1024, %v1056
          %v1073 = vmax.f32 %v1025, %v1057
          %v1074 = vmax.f32 %v1026, %v1058
          %v1075 = vmax.f32 %v1027, %v1059
          %v1076 = vmax.f32 %v1028, %v1060
          %v1077 = vmin.f32 %v1069, %v1061
          %v1078 = vmin.f32 %v1070, %v1062
          %v1079 = vmin.f32 %v1071, %v1063
          %v1080 = vmin.f32 %v1072, %v1064
          %v1081 = vmin.f32 %v1073, %v1065
          %v1082 = vmin.f32 %v1074, %v1066
          %v1083 = vmin.f32 %v1075, %v1067
          %v1084 = vmin.f32 %v1076, %v1068
          %1085 = vst [vmem:[%s177] sm:$0xff] %v1077
          %1086 = vst [vmem:[%s177 + $0x8] sm:$0xff] %v1078
          %1087 = vst [vmem:[%s177 + $0x10] sm:$0xff] %v1079
          %1088 = vst [vmem:[%s177 + $0x18] sm:$0xff] %v1080
          %1089 = vst [vmem:[%s177 + $0x20] sm:$0xff] %v1081
          %1090 = vst [vmem:[%s177 + $0x28] sm:$0xff] %v1082
          %1091 = vst [vmem:[%s177 + $0x30] sm:$0xff] %v1083
          %1092 = vst [vmem:[%s177 + $0x38] sm:$0xff] %v1084
        $region44: #{augmenter_forward.1} parent=27 // pred_fallthru
          _
        %s1093 = sand.u32 %s75, 1
        %s1094 = scalar_lea.sflag [#allocation4], %s1093
        %s1095 = sand.u32 %s75, 1
        %s1096 = smul.addr %s1095, 64
        %s1097 = scalar_lea.vmem [#allocation7], %s1096
        // Predicated region
        $region45: #{augmenter_forward.1} parent=27 // pred_check
          %p1098 = pneg %p85
        $region46: #{augmenter_forward.1} parent=27 // pred_check_branch
          %1100 = sbr.rel (%p1098) target = $region48
        $region47: #{augmenter_forward.1} parent=27 // pred_region
          %1102 = vsyncadd %s1094, 0
          %s1103 = smul.addr %s20, 8
          %s1104 = smul.addr %s1103, 8
          %s1105 = scalar_lea.hbm %s2, %s1104
          %s1106 = sshll.u32 %s1097, 4
          %s1107 = int_to_ptr.vmem [resolvable:$true] %s1106
          %s1108 = sshll.u32 %s1105, 4
          %s1109 = int_to_ptr.hbm [resolvable:$true] %s1108
          %1114 = dma.vmem_to_hbm [thread:$0]  %s1107, 1024, %s1109, %s1094, 128, 128, 8
        $region48: #{augmenter_forward.1} parent=27 // pred_fallthru
          _
      $region28: #{augmenter_forward.1} parent=5 // pred_fallthru
        _
      %p1115 = scmp.le.s32.totalorder 2, %s15
      // Predicated region
      $region49: #{augmenter_forward.1} parent=5 // pred_check
        %p1116 = pneg %p1115
      $region50: #{augmenter_forward.1} parent=5 // pred_check_branch
        %1118 = sbr.rel (%p1116) target = $region52
      $region51: #{augmenter_forward.1} parent=5 // pred_region
        %s1119 = ssub.s32 %s15, 2
        // Predicated region
        $region53: #{augmenter_forward.1} parent=51 // pred_check
          %p1120 = pneg %p91
        $region54: #{augmenter_forward.1} parent=51 // pred_check_branch
          %1122 = sbr.rel (%p1120) target = $region56
        $region55: #{augmenter_forward.1} parent=51 // pred_region
          %s1123 = sand.u32 %s76, 1
          %s1124 = scalar_lea.sflag [#allocation4], %s1123
          %s1125 = sand.u32 %s76, 1
          %s1126 = smul.addr %s1125, 64
          %s1127 = scalar_lea.vmem [#allocation7], %s1126
          %1129 = dma.done %s1124, 1024
        $region56: #{augmenter_forward.1} parent=51 // pred_fallthru
          _
      $region52: #{augmenter_forward.1} parent=5 // pred_fallthru
        _
    $region6: #{augmenter_forward.1} parent=1 // loop_footer
      %s19 = sadd.s32 1, %s15
    $region7: #{augmenter_forward.1} parent=1 // loop_footer_branch
      %14 = sbr.rel target = $region3
    $region8: #{augmenter_forward.1} parent=1 // loop_exit
      _
    %1130 = vsyncpa [#allocation3], 1
    %s1131 = scalar_lea.sflag [#allocation3], 1
    %1132 = vsyncpa %s1131, 1
    %1133 = vsyncpa [#allocation4], 1
    %s1134 = scalar_lea.sflag [#allocation4], 1
    %1135 = vsyncpa %s1134, 1
    %1136 = vsyncpa [#allocation5], 1
    %s1137 = scalar_lea.sflag [#allocation5], 1
    %1138 = vsyncpa %s1137, 1

</llo_original>
